<compile_context>
chip_gen: v7x
topology: tpu7x:2x2x1
jax: 0.10.0
libtpu: 0.0.40
codegen_flags: <defaults>
</compile_context>

<pallas_src>
import jax
import jax.numpy as jnp
from jax.experimental import pallas as pl
from jax.experimental.pallas import tpu as pltpu


def fuse_embeddings_kernel(u_ref, p_ref, wu_ref, wp_ref, b_ref, out_ref):
    # u_ref : (tm, Du)  user-embedding rows            (compute dtype, e.g. bf16)
    # p_ref : (tm, Dp)  poi-embedding rows             (compute dtype)
    # wu_ref: (Du, D)   = W[:, :Du].T                  (compute dtype)
    # wp_ref: (Dp, D)   = W[:, Du:].T                  (compute dtype)
    # b_ref : (1, D)    bias                           (f32)
    # out_ref: (tm, D)
    acc = jnp.dot(u_ref[...], wu_ref[...], preferred_element_type=jnp.float32)
    acc = acc + jnp.dot(p_ref[...], wp_ref[...], preferred_element_type=jnp.float32)
    acc = acc + b_ref[...]                              # broadcast bias over rows
    # LeakyReLU(0.2): for x < 0, 0.2*x > x, so max(x, 0.2*x) is exactly LeakyReLU.
    out_ref[...] = jnp.maximum(acc, 0.2 * acc).astype(out_ref.dtype)


def _choose_row_tile(M, tm_req):
    """Row tile: multiple of 8 (sublanes), <= M, and small enough that the 1-D
    grid gets >= 2 steps whenever possible (v7x has two TensorCores)."""
    if M <= 8:
        return M                                   # single full block (block == array dim)
    cap = max(8, (pl.cdiv(M, 2) // 8) * 8)         # ~half the rows, floored to 8
    tm = min(tm_req, cap, M)
    return max(8, (tm // 8) * 8)


def prepare_fuse_params(weight, bias, user_dim, *, compute_dtype=jnp.bfloat16):
    """Do the split / transpose / cast of the Linear params ONCE.
    weight: (D, D) torch layout (out_features, in_features), bias: (D,)."""
    D = weight.shape[0]
    assert weight.shape == (D, D) and bias.shape == (D,)
    wu_t = weight[:, :user_dim].T.astype(compute_dtype)   # (Du, D)
    wp_t = weight[:, user_dim:].T.astype(compute_dtype)   # (Dp, D)
    b2 = bias.reshape(1, D).astype(jnp.float32)           # added to f32 accumulator
    return wu_t, wp_t, b2


def fuse_embeddings_forward(user_embed, poi_embed, wu_t, wp_t, bias2d, *,
                            tm=4096, compute_dtype=jnp.bfloat16, out_dtype=None):
    """user_embed: (B, S, Du), poi_embed: (B, S, Dp),
       wu_t/wp_t/bias2d from prepare_fuse_params.
       Returns (B, S, D) = LeakyReLU_0.2(Linear(cat(user, poi, -1)))."""
    B, S, Du = user_embed.shape
    Dp = poi_embed.shape[-1]
    D = Du + Dp
    assert wu_t.shape == (Du, D) and wp_t.shape == (Dp, D) and bias2d.shape == (1, D)
    out_dtype = user_embed.dtype if out_dtype is None else out_dtype

    M = B * S
    u2 = user_embed.reshape(M, Du).astype(compute_dtype)
    p2 = poi_embed.reshape(M, Dp).astype(compute_dtype)
    wu_t = wu_t.astype(compute_dtype)
    wp_t = wp_t.astype(compute_dtype)
    b2 = bias2d.astype(jnp.float32)

    tm = _choose_row_tile(M, tm)
    grid = (pl.cdiv(M, tm),)

    # VMEM budget: double-buffered u/p/out streams + resident weights/bias +
    # headroom for the in-kernel f32 accumulator; clamped to [32, 64] MiB.
    in_b = jnp.dtype(compute_dtype).itemsize
    out_b = jnp.dtype(out_dtype).itemsize
    est = (2 * tm * (Du + Dp) * in_b            # u/p double-buffers
           + 2 * tm * D * out_b                 # out double-buffers
           + 2 * (Du + Dp) * D * in_b + 2 * D * 4   # weight halves + bias
           + 2 * tm * D * 4)                    # f32 accumulator temps
    vmem_limit = int(min(64 * 1024 * 1024, max(32 * 1024 * 1024, 2 * est)))

    out = pl.pallas_call(
        fuse_embeddings_kernel,
        out_shape=jax.ShapeDtypeStruct((M, D), out_dtype),
        grid=grid,
        in_specs=[
            pl.BlockSpec((tm, Du), lambda i: (i, 0)),
            pl.BlockSpec((tm, Dp), lambda i: (i, 0)),
            pl.BlockSpec((Du, D), lambda i: (0, 0)),   # VMEM-resident weight half
            pl.BlockSpec((Dp, D), lambda i: (0, 0)),   # VMEM-resident weight half
            pl.BlockSpec((1, D), lambda i: (0, 0)),    # VMEM-resident bias
        ],
        out_specs=pl.BlockSpec((tm, D), lambda i: (i, 0)),
        compiler_params=pltpu.CompilerParams(
            dimension_semantics=("parallel",),
            vmem_limit_bytes=vmem_limit),
    )(u2, p2, wu_t, wp_t, b2)
    return out.reshape(B, S, D)


def fuse_embeddings_reference(user_embed, poi_embed, weight, bias):
    """Pure-JAX f32 reference matching FuseEmbeddings.forward."""
    x = jnp.concatenate([user_embed, poi_embed], axis=2)          # (B, S, D)
    y = jnp.einsum("bsd,od->bso", x, weight) + bias               # nn.Linear
    return jnp.where(y >= 0, y, 0.2 * y)                          # LeakyReLU(0.2)


def init_params(key, embed_dim):
    """Deterministic stand-in for nn.Linear(embed_dim, embed_dim) params."""
    kw, kb = jax.random.split(key)
    bound = 1.0 / (embed_dim ** 0.5)
    weight = jax.random.uniform(kw, (embed_dim, embed_dim), jnp.float32,
                                -bound, bound)
    bias = jax.random.uniform(kb, (embed_dim,), jnp.float32, -bound, bound)
    return weight, bias


if __name__ == "__main__":
    batch, seq_len = 2, 8
    user_dim, poi_dim = 64, 64          # embed_dim = 128 -> lane-dense output
    embed_dim = user_dim + poi_dim

    key = jax.random.PRNGKey(0)
    ku, kp, kparams = jax.random.split(key, 3)
    user_embed = jax.random.normal(ku, (batch, seq_len, user_dim), jnp.float32)
    poi_embed = jax.random.normal(kp, (batch, seq_len, poi_dim), jnp.float32)
    weight, bias = init_params(kparams, embed_dim)

    # One-time param prep (split/transpose/cast), then the fused kernel call.
    wu_t, wp_t, b2 = prepare_fuse_params(weight, bias, user_dim)
    out = fuse_embeddings_forward(user_embed, poi_embed, wu_t, wp_t, b2)
    out = jax.block_until_ready(out)

    ref = fuse_embeddings_reference(user_embed, poi_embed, weight, bias)
    assert out.shape == (batch, seq_len, embed_dim)
    assert out.dtype == user_embed.dtype
    # bf16-rounded inputs/weights vs f32 reference (accumulation is f32):
    # tolerance loosened accordingly.
    assert jnp.allclose(out, ref, atol=5e-2, rtol=5e-2), (
        float(jnp.max(jnp.abs(out - ref))))

    print("KERNEL_OK")
</pallas_src>

<mosaic_0001>
module attributes {stable_mosaic.version = 11 : i64} {
  func.func @fuse_embeddings_kernel(%arg0: i32, %arg1: memref<8x64xbf16, #tpu.memory_space<vmem>>, %arg2: memref<8x64xbf16, #tpu.memory_space<vmem>>, %arg3: memref<64x128xbf16, #tpu.memory_space<vmem>>, %arg4: memref<64x128xbf16, #tpu.memory_space<vmem>>, %arg5: memref<1x128xf32, #tpu.memory_space<vmem>>, %arg6: memref<8x128xf32, #tpu.memory_space<vmem>>) attributes {dimension_semantics = [#tpu.dimension_semantics<parallel>], iteration_bounds = array<i64: 2>, scalar_prefetch = 0 : i64, scratch_operands = 0 : i64, tpu.core_type = #tpu.core_type<tc>, window_params = [{transform_indices = @transform_0, window_bounds = array<i64: 8, 64>}, {transform_indices = @transform_1, window_bounds = array<i64: 8, 64>}, {pipeline_mode = #tpu.pipeline_mode<synchronous>, transform_indices = @transform_2, window_bounds = array<i64: 64, 128>}, {pipeline_mode = #tpu.pipeline_mode<synchronous>, transform_indices = @transform_3, window_bounds = array<i64: 64, 128>}, {pipeline_mode = #tpu.pipeline_mode<synchronous>, transform_indices = @transform_4, window_bounds = array<i64: 1, 128>}, {transform_indices = @transform_5, window_bounds = array<i64: 8, 128>}]} {
    %c0 = arith.constant 0 : index
    %c0_0 = arith.constant 0 : index
    %0 = vector.load %arg1[%c0, %c0_0] : memref<8x64xbf16, #tpu.memory_space<vmem>>, vector<8x64xbf16>
    %c0_1 = arith.constant 0 : index
    %c0_2 = arith.constant 0 : index
    %1 = vector.load %arg3[%c0_1, %c0_2] : memref<64x128xbf16, #tpu.memory_space<vmem>>, vector<64x128xbf16>
    %cst = arith.constant dense<0.000000e+00> : vector<8x128xf32>
    %2 = tpu.matmul %0, %1, %cst {dimension_numbers = #tpu.dot_dimension_numbers<[1], [0], [0], [1], [0, 0, 1, 1], [], []>} : vector<8x64xbf16>, vector<64x128xbf16>, vector<8x128xf32> -> vector<8x128xf32>
    %c0_3 = arith.constant 0 : index
    %c0_4 = arith.constant 0 : index
    %3 = vector.load %arg2[%c0_3, %c0_4] : memref<8x64xbf16, #tpu.memory_space<vmem>>, vector<8x64xbf16>
    %c0_5 = arith.constant 0 : index
    %c0_6 = arith.constant 0 : index
    %4 = vector.load %arg4[%c0_5, %c0_6] : memref<64x128xbf16, #tpu.memory_space<vmem>>, vector<64x128xbf16>
    %cst_7 = arith.constant dense<0.000000e+00> : vector<8x128xf32>
    %5 = tpu.matmul %3, %4, %cst_7 {dimension_numbers = #tpu.dot_dimension_numbers<[1], [0], [0], [1], [0, 0, 1, 1], [], []>} : vector<8x64xbf16>, vector<64x128xbf16>, vector<8x128xf32> -> vector<8x128xf32>
    %6 = arith.addf %2, %5 : vector<8x128xf32>
    %c0_8 = arith.constant 0 : index
    %c0_9 = arith.constant 0 : index
    %7 = vector.load %arg5[%c0_8, %c0_9] : memref<1x128xf32, #tpu.memory_space<vmem>>, vector<1x128xf32>
    %8 = vector.broadcast %7 : vector<1x128xf32> to vector<8x128xf32>
    %9 = arith.addf %6, %8 : vector<8x128xf32>
    %cst_10 = arith.constant 2.000000e-01 : f32
    %10 = vector.broadcast %cst_10 : f32 to vector<8x128xf32>
    %11 = arith.mulf %10, %9 : vector<8x128xf32>
    %12 = arith.maximumf %9, %11 : vector<8x128xf32>
    %c0_11 = arith.constant 0 : index
    %c0_12 = arith.constant 0 : index
    %13 = vector.load %arg6[%c0_11, %c0_12] : memref<8x128xf32, #tpu.memory_space<vmem>>, vector<8x128xf32>
    tpu.vector_store %arg6[%c0_11, %c0_12], %12 {strides = array<i32>} : memref<8x128xf32, #tpu.memory_space<vmem>>, vector<8x128xf32>,
    return
  }
  func.func @transform_0(%arg0: i32) -> (i32, i32) {
    %c0_i32 = arith.constant 0 : i32
    %c0_i32_0 = arith.constant 0 : i32
    return %arg0, %c0_i32 : i32, i32
  }
  func.func @transform_1(%arg0: i32) -> (i32, i32) {
    %c0_i32 = arith.constant 0 : i32
    %c0_i32_0 = arith.constant 0 : i32
    return %arg0, %c0_i32 : i32, i32
  }
  func.func @transform_2(%arg0: i32) -> (i32, i32) {
    %c0_i32 = arith.constant 0 : i32
    %c0_i32_0 = arith.constant 0 : i32
    %c0_i32_1 = arith.constant 0 : i32
    return %c0_i32, %c0_i32_0 : i32, i32
  }
  func.func @transform_3(%arg0: i32) -> (i32, i32) {
    %c0_i32 = arith.constant 0 : i32
    %c0_i32_0 = arith.constant 0 : i32
    %c0_i32_1 = arith.constant 0 : i32
    return %c0_i32, %c0_i32_0 : i32, i32
  }
  func.func @transform_4(%arg0: i32) -> (i32, i32) {
    %c0_i32 = arith.constant 0 : i32
    %c0_i32_0 = arith.constant 0 : i32
    %c0_i32_1 = arith.constant 0 : i32
    return %c0_i32, %c0_i32_0 : i32, i32
  }
  func.func @transform_5(%arg0: i32) -> (i32, i32) {
    %c0_i32 = arith.constant 0 : i32
    %c0_i32_0 = arith.constant 0 : i32
    return %arg0, %c0_i32 : i32, i32
  }
}

</mosaic_0001>

<llo_original>
// kernel: tpu_custom_call.1
$region0: #{tpu_custom_call.1}
  #allocation0 [shape = 'u32[]', space=smem, size = 0x4, offset = 0x4, fixed_abs, tag = 'smem constant byte address 0x4 - core index']
  #allocation1 [shape = 'u32[144,128]{1,0:T(1,128)}', space=vmem, size = 0x12000, scoped, tag = 'internal scratch']
  %s0 = inlined_call_operand.hbm [shape: bf16[16,64], index: 0, kind: input, shape index: {}]
  %s1 = inlined_call_operand.hbm [shape: bf16[16,64], index: 1, kind: input, shape index: {}]
  %s2 = inlined_call_operand.hbm [shape: bf16[64,128], index: 2, kind: input, shape index: {}]
  %s3 = inlined_call_operand.hbm [shape: bf16[64,128], index: 3, kind: input, shape index: {}]
  %s4 = inlined_call_operand.vmem [shape: f32[1,128], index: 4, kind: input, shape index: {}]
  %s5 = inlined_call_operand.hbm [shape: f32[16,128], index: 5, kind: output, shape index: {}]
  %s6 = sld [smem:[#allocation0]]
  $region69: #{tpu_custom_call.1} parent=0
    _
  %s8 = ssub.s32 1, %s6
  %s9 = scalar_select 0, %s8, %s6
  $region1: #{tpu_custom_call.1} parent=0
    #allocation2 [shape = 'u8[4096]{0}', space=vmem, size = 0x1000, scoped, tag = 'input window, operand 0']
    #allocation3 [shape = 's32[2]{0}', space=sflag, size = 0x8, scoped, tag = 'scoped memory for tpu_custom_call.1']
    #allocation4 [shape = 's32[2]{0}', space=sflag, size = 0x8, scoped, tag = 'scoped memory for tpu_custom_call.1']
    #allocation5 [shape = 'u8[4096]{0}', space=vmem, size = 0x1000, scoped, tag = 'input window, operand 1']
    #allocation6 [shape = 's32[2]{0}', space=sflag, size = 0x8, scoped, tag = 'scoped memory for tpu_custom_call.1']
    #allocation7 [shape = 'u8[16384]{0}', space=vmem, size = 0x4000, scoped, tag = 'input window, operand 2, single buffered']
    #allocation8 [shape = 'u8[16384]{0}', space=vmem, size = 0x4000, scoped, tag = 'input window, operand 3, single buffered']
    #allocation9 [shape = 's32[1]{0}', space=sflag, size = 0x4, scoped, tag = 'scoped memory for tpu_custom_call.1']
    #allocation10 [shape = 'u8[8192]{0}', space=vmem, size = 0x2000, scoped, tag = 'output window, operand 0']
    %10 = vsyncpa [#allocation3], 0
    %s11 = scalar_lea.sflag [#allocation3], 1
    %12 = vsyncpa %s11, 0
    %13 = vsyncpa [#allocation6], 0
    %s14 = scalar_lea.sflag [#allocation6], 1
    %15 = vsyncpa %s14, 0
    %16 = vsyncpa [#allocation9], 0
    %17 = vsyncpa [#allocation4], 0
    %s18 = scalar_lea.sflag [#allocation4], 1
    %19 = vsyncpa %s18, 0
    loop: start=0, step=1, limit=4
    $region2: #{tpu_custom_call.1} parent=1 // loop_pre_header
      _
    $region3: #{tpu_custom_call.1} parent=1 // loop_header
      %s21 = sphi 0, %s25
      %p22 = scmp.ge.s32.totalorder %s21, 4
      %s31 = sphi 0, %s33
      %s34 = sphi 0, %s31
      %s35 = sphi 0, %s34
      %s51 = sphi 0, %s35
      %s57 = sphi 0, %s59
      %s60 = sphi 0, %s57
      %s61 = sphi 0, %s60
      %s77 = sphi 0, %s61
      %s81 = sphi 0, %s81
      %s83 = sphi 0, %s81
      %s84 = sphi 0, %s83
      %s98 = sphi 0, %s84
      %s102 = sphi 0, %s102
      %s104 = sphi 0, %s102
      %s105 = sphi 0, %s104
      %s119 = sphi 0, %s105
      %s123 = sphi 0, %s123
      %s125 = sphi 0, %s123
      %s126 = sphi 0, %s125
      %s140 = sphi 0, %s126
      %s146 = sphi 0, %s148
      %s149 = sphi 0, %s146
      %s150 = sphi 0, %s149
      %s166 = sphi 0, %s150
    $region4: #{tpu_custom_call.1} parent=1 // loop_header_branch
      %24 = sbr.rel (%p22) target = $region8
    $region5: #{tpu_custom_call.1} parent=1 // loop_body
      %s26 = ssub.s32 %s21, 1
      %s27 = ssub.s32 %s21, 2
      %s28 = sadd.s32 %s21, 1
      %s29 = ssub.s32 %s21, %s28
      %p30 = scmp.eq.s32.totalorder %s29, 0
      %s32 = sadd.s32 %s31, 1
      %s33 = scalar_select %p30, %s31, %s32
      %p36 = pneg %p30
      %p37 = scmp.eq.s32.totalorder %s21, 1
      %p38 = por %p36, %p37
      %p39 = scmp.ne.s32.totalorder %s31, %s34
      %p40 = scmp.eq.s32.totalorder %s21, 0
      %p41 = por %p39, %p40
      %p42 = scmp.ne.s32.totalorder %s31, %s34
      %p43 = scmp.eq.s32.totalorder %s26, 1
      %p44 = por %p42, %p43
      %p45 = scmp.ne.s32.totalorder %s34, %s35
      %p46 = scmp.eq.s32.totalorder %s26, 0
      %p47 = por %p45, %p46
      %p48 = scmp.ne.s32.totalorder %s34, %s35
      %p49 = scmp.eq.s32.totalorder %s27, 1
      %p50 = por %p48, %p49
      %p52 = scmp.ne.s32.totalorder %s35, %s51
      %p53 = scmp.eq.s32.totalorder %s27, 0
      %p54 = por %p52, %p53
      %s55 = ssub.s32 %s21, %s28
      %p56 = scmp.eq.s32.totalorder %s55, 0
      %s58 = sadd.s32 %s57, 1
      %s59 = scalar_select %p56, %s57, %s58
      %p62 = pneg %p56
      %p63 = scmp.eq.s32.totalorder %s21, 1
      %p64 = por %p62, %p63
      %p65 = scmp.ne.s32.totalorder %s57, %s60
      %p66 = scmp.eq.s32.totalorder %s21, 0
      %p67 = por %p65, %p66
      %p68 = scmp.ne.s32.totalorder %s57, %s60
      %p69 = scmp.eq.s32.totalorder %s26, 1
      %p70 = por %p68, %p69
      %p71 = scmp.ne.s32.totalorder %s60, %s61
      %p72 = scmp.eq.s32.totalorder %s26, 0
      %p73 = por %p71, %p72
      %p74 = scmp.ne.s32.totalorder %s60, %s61
      %p75 = scmp.eq.s32.totalorder %s27, 1
      %p76 = por %p74, %p75
      %p78 = scmp.ne.s32.totalorder %s61, %s77
      %p79 = scmp.eq.s32.totalorder %s27, 0
      %p80 = por %p78, %p79
      %s82 = sadd.s32 %s81, 1
      %p85 = scmp.eq.s32.totalorder %s21, 1
      %p86 = scmp.ne.s32.totalorder %s81, %s83
      %p87 = scmp.eq.s32.totalorder %s21, 0
      %p88 = por %p86, %p87
      %p89 = scmp.ne.s32.totalorder %s81, %s83
      %p90 = scmp.eq.s32.totalorder %s26, 1
      %p91 = por %p89, %p90
      %p92 = scmp.ne.s32.totalorder %s83, %s84
      %p93 = scmp.eq.s32.totalorder %s26, 0
      %p94 = por %p92, %p93
      %p95 = scmp.ne.s32.totalorder %s83, %s84
      %p96 = scmp.eq.s32.totalorder %s27, 1
      %p97 = por %p95, %p96
      %p99 = scmp.ne.s32.totalorder %s84, %s98
      %p100 = scmp.eq.s32.totalorder %s27, 0
      %p101 = por %p99, %p100
      %s103 = sadd.s32 %s102, 1
      %p106 = scmp.eq.s32.totalorder %s21, 1
      %p107 = scmp.ne.s32.totalorder %s102, %s104
      %p108 = scmp.eq.s32.totalorder %s21, 0
      %p109 = por %p107, %p108
      %p110 = scmp.ne.s32.totalorder %s102, %s104
      %p111 = scmp.eq.s32.totalorder %s26, 1
      %p112 = por %p110, %p111
      %p113 = scmp.ne.s32.totalorder %s104, %s105
      %p114 = scmp.eq.s32.totalorder %s26, 0
      %p115 = por %p113, %p114
      %p116 = scmp.ne.s32.totalorder %s104, %s105
      %p117 = scmp.eq.s32.totalorder %s27, 1
      %p118 = por %p116, %p117
      %p120 = scmp.ne.s32.totalorder %s105, %s119
      %p121 = scmp.eq.s32.totalorder %s27, 0
      %p122 = por %p120, %p121
      %s124 = sadd.s32 %s123, 1
      %p127 = scmp.eq.s32.totalorder %s21, 1
      %p128 = scmp.ne.s32.totalorder %s123, %s125
      %p129 = scmp.eq.s32.totalorder %s21, 0
      %p130 = por %p128, %p129
      %p131 = scmp.ne.s32.totalorder %s123, %s125
      %p132 = scmp.eq.s32.totalorder %s26, 1
      %p133 = por %p131, %p132
      %p134 = scmp.ne.s32.totalorder %s125, %s126
      %p135 = scmp.eq.s32.totalorder %s26, 0
      %p136 = por %p134, %p135
      %p137 = scmp.ne.s32.totalorder %s125, %s126
      %p138 = scmp.eq.s32.totalorder %s27, 1
      %p139 = por %p137, %p138
      %p141 = scmp.ne.s32.totalorder %s126, %s140
      %p142 = scmp.eq.s32.totalorder %s27, 0
      %p143 = por %p141, %p142
      %s144 = ssub.s32 %s21, %s28
      %p145 = scmp.eq.s32.totalorder %s144, 0
      %s147 = sadd.s32 %s146, 1
      %s148 = scalar_select %p145, %s146, %s147
      %p151 = pneg %p145
      %p152 = scmp.eq.s32.totalorder %s21, 1
      %p153 = por %p151, %p152
      %p154 = scmp.ne.s32.totalorder %s146, %s149
      %p155 = scmp.eq.s32.totalorder %s21, 0
      %p156 = por %p154, %p155
      %p157 = scmp.ne.s32.totalorder %s146, %s149
      %p158 = scmp.eq.s32.totalorder %s26, 1
      %p159 = por %p157, %p158
      %p160 = scmp.ne.s32.totalorder %s149, %s150
      %p161 = scmp.eq.s32.totalorder %s26, 0
      %p162 = por %p160, %p161
      %p163 = scmp.ne.s32.totalorder %s149, %s150
      %p164 = scmp.eq.s32.totalorder %s27, 1
      %p165 = por %p163, %p164
      %p167 = scmp.ne.s32.totalorder %s150, %s166
      %p168 = scmp.eq.s32.totalorder %s27, 0
      %p169 = por %p167, %p168
      %p170 = scmp.le.s32.totalorder 1, %s21
      %p171 = scmp.lt.s32.totalorder %s21, 3
      %p172 = pnand %p170, %p171
      %p173 = pneg %p172
      // Predicated region
      $region9: #{tpu_custom_call.1} parent=5 // pred_check
        _
      $region10: #{tpu_custom_call.1} parent=5 // pred_check_branch
        %175 = sbr.rel (%p172) target = $region12
      $region11: #{tpu_custom_call.1} parent=5 // pred_region
        %s176 = ssub.s32 %s21, 1
        // Predicated region
        $region13: #{tpu_custom_call.1} parent=11 // pred_check
          %p177 = pneg %p94
        $region14: #{tpu_custom_call.1} parent=11 // pred_check_branch
          %179 = sbr.rel (%p177) target = $region16
        $region15: #{tpu_custom_call.1} parent=11 // pred_region
          %s181 = ssub.s32 512, 512
          %182 = vsyncadd [#allocation6], %s181
          %s183 = sshll.u32 [#allocation7], 4
          %s184 = int_to_ptr.vmem [resolvable:$true] %s183
          %189 = dma.hbm_to_vmem [thread:$0]  %s2, 512, %s184, [#allocation6], 64, 64, 4
        $region16: #{tpu_custom_call.1} parent=11 // pred_fallthru
          _
        // Predicated region
        $region17: #{tpu_custom_call.1} parent=11 // pred_check
          %p190 = pneg %p115
        $region18: #{tpu_custom_call.1} parent=11 // pred_check_branch
          %192 = sbr.rel (%p190) target = $region20
        $region19: #{tpu_custom_call.1} parent=11 // pred_region
          %s194 = ssub.s32 512, 512
          %195 = vsyncadd [#allocation9], %s194
          %s196 = sshll.u32 [#allocation8], 4
          %s197 = int_to_ptr.vmem [resolvable:$true] %s196
          %202 = dma.hbm_to_vmem [thread:$0]  %s3, 512, %s197, [#allocation9], 64, 64, 4
        $region20: #{tpu_custom_call.1} parent=11 // pred_fallthru
          _
        // Predicated region
        $region21: #{tpu_custom_call.1} parent=11 // pred_check
          %p203 = pneg %p136
        $region22: #{tpu_custom_call.1} parent=11 // pred_check_branch
          %205 = sbr.rel (%p203) target = $region24
        $region23: #{tpu_custom_call.1} parent=11 // pred_region
          _
        $region24: #{tpu_custom_call.1} parent=11 // pred_fallthru
          _
      $region12: #{tpu_custom_call.1} parent=5 // pred_fallthru
        _
      %p206 = scmp.lt.s32.totalorder %s21, 2
      // Predicated region
      $region25: #{tpu_custom_call.1} parent=5 // pred_check
        %p207 = pneg %p206
      $region26: #{tpu_custom_call.1} parent=5 // pred_check_branch
        %209 = sbr.rel (%p207) target = $region28
      $region27: #{tpu_custom_call.1} parent=5 // pred_region
        // Predicated region
        $region29: #{tpu_custom_call.1} parent=27 // pred_check
          %p210 = pneg %p41
        $region30: #{tpu_custom_call.1} parent=27 // pred_check_branch
          %212 = sbr.rel (%p210) target = $region32
        $region31: #{tpu_custom_call.1} parent=27 // pred_region
          %s213 = sand.u32 %s31, 1
          %s214 = scalar_lea.sflag [#allocation3], %s213
          %s215 = sand.u32 %s31, 1
          %s216 = smul.addr %s215, 4
          %s217 = scalar_lea.vmem [#allocation2], %s216
          %s219 = ssub.s32 64, 64
          %220 = vsyncadd %s214, %s219
          %s221 = smul.addr %s21, 64
          %s222 = scalar_lea.hbm %s0, %s221
          %s224 = sshll.u32 %s217, 4
          %s225 = int_to_ptr.vmem [resolvable:$true] %s224
          %227 = dma.hbm_to_vmem [thread:$0]  %s222, 64, %s225, %s214
        $region32: #{tpu_custom_call.1} parent=27 // pred_fallthru
          _
        // Predicated region
        $region33: #{tpu_custom_call.1} parent=27 // pred_check
          %p228 = pneg %p67
        $region34: #{tpu_custom_call.1} parent=27 // pred_check_branch
          %230 = sbr.rel (%p228) target = $region36
        $region35: #{tpu_custom_call.1} parent=27 // pred_region
          %s231 = sand.u32 %s21, 1
          %s232 = scalar_lea.sflag [#allocation6], %s231
          %s233 = sand.u32 %s57, 1
          %s234 = smul.addr %s233, 4
          %s235 = scalar_lea.vmem [#allocation5], %s234
          %s237 = ssub.s32 64, 64
          %238 = vsyncadd %s232, %s237
          %s239 = smul.addr %s21, 64
          %s240 = scalar_lea.hbm %s1, %s239
          %s242 = sshll.u32 %s235, 4
          %s243 = int_to_ptr.vmem [resolvable:$true] %s242
          %245 = dma.hbm_to_vmem [thread:$0]  %s240, 64, %s243, %s232
        $region36: #{tpu_custom_call.1} parent=27 // pred_fallthru
          _
      $region28: #{tpu_custom_call.1} parent=5 // pred_fallthru
        _
      %p246 = scmp.le.s32.totalorder 1, %s21
      %p247 = scmp.lt.s32.totalorder %s21, 3
      %p248 = pnand %p246, %p247
      %p249 = pneg %p248
      // Predicated region
      $region37: #{tpu_custom_call.1} parent=5 // pred_check
        _
      $region38: #{tpu_custom_call.1} parent=5 // pred_check_branch
        %251 = sbr.rel (%p248) target = $region40
      $region39: #{tpu_custom_call.1} parent=5 // pred_region
        %s252 = ssub.s32 %s21, 1
        %s253 = sand.u32 %s34, 1
        %s254 = scalar_lea.sflag [#allocation3], %s253
        %s255 = sand.u32 %s34, 1
        %s256 = smul.addr %s255, 4
        %s257 = scalar_lea.vmem [#allocation2], %s256
        // Predicated region
        $region41: #{tpu_custom_call.1} parent=39 // pred_check
          %p258 = pneg %p47
        $region42: #{tpu_custom_call.1} parent=39 // pred_check_branch
          %260 = sbr.rel (%p258) target = $region44
        $region43: #{tpu_custom_call.1} parent=39 // pred_region
          %261 = dma.done %s254, 64
        $region44: #{tpu_custom_call.1} parent=39 // pred_fallthru
          _
        %s262 = sand.u32 %s26, 1
        %s263 = scalar_lea.sflag [#allocation6], %s262
        %s264 = sand.u32 %s60, 1
        %s265 = smul.addr %s264, 4
        %s266 = scalar_lea.vmem [#allocation5], %s265
        // Predicated region
        $region45: #{tpu_custom_call.1} parent=39 // pred_check
          %p267 = pneg %p73
        $region46: #{tpu_custom_call.1} parent=39 // pred_check_branch
          %269 = sbr.rel (%p267) target = $region48
        $region47: #{tpu_custom_call.1} parent=39 // pred_region
          %270 = dma.done %s263, 64
        $region48: #{tpu_custom_call.1} parent=39 // pred_fallthru
          _
        // Predicated region
        $region49: #{tpu_custom_call.1} parent=39 // pred_check
          %p271 = pneg %p94
        $region50: #{tpu_custom_call.1} parent=39 // pred_check_branch
          %273 = sbr.rel (%p271) target = $region52
        $region51: #{tpu_custom_call.1} parent=39 // pred_region
          %274 = dma.done [#allocation6], 512
        $region52: #{tpu_custom_call.1} parent=39 // pred_fallthru
          _
        // Predicated region
        $region53: #{tpu_custom_call.1} parent=39 // pred_check
          %p275 = pneg %p115
        $region54: #{tpu_custom_call.1} parent=39 // pred_check_branch
          %277 = sbr.rel (%p275) target = $region56
        $region55: #{tpu_custom_call.1} parent=39 // pred_region
          %278 = dma.done [#allocation9], 512
        $region56: #{tpu_custom_call.1} parent=39 // pred_fallthru
          _
        %s279 = sand.u32 %s34, 1
        %s280 = scalar_lea.sflag [#allocation3], %s279
        %s281 = sand.u32 %s34, 1
        %s282 = smul.addr %s281, 4
        %s283 = scalar_lea.vmem [#allocation2], %s282
        %p284 = pneg %p47
        %p285 = pneg %p44
        %s286 = sand.u32 %s26, 1
        %s287 = scalar_lea.sflag [#allocation6], %s286
        %s288 = sand.u32 %s60, 1
        %s289 = smul.addr %s288, 4
        %s290 = scalar_lea.vmem [#allocation5], %s289
        %p291 = pneg %p73
        %p292 = pneg %p70
        %p293 = pneg %p94
        %p294 = pneg %p91
        %p295 = pneg %p115
        %p296 = pneg %p112
        %p297 = pneg %p136
        %p298 = pneg %p133
        %p299 = pneg %p162
        %p300 = pneg %p159
        %s301 = sand.u32 %s149, 1
        %s302 = scalar_lea.sflag [#allocation4], %s301
        %s303 = sand.u32 %s149, 1
        %s304 = smul.addr %s303, 8
        %s305 = scalar_lea.vmem [#allocation10], %s304
        %v307 = vld [vmem:[%s257] sm:$0xf]
        %v308 = vld [vmem:[#allocation7] sm:$0xf]
        %v309 = vld [vmem:[#allocation7 + $0x4] sm:$0xf]
        %v310 = vld [vmem:[#allocation7 + $0x8] sm:$0xf]
        %v311 = vld [vmem:[#allocation7 + $0xc] sm:$0xf]
        %v312 = vld [vmem:[#allocation7 + $0x10] sm:$0xf]
        %v313 = vld [vmem:[#allocation7 + $0x14] sm:$0xf]
        %v314 = vld [vmem:[#allocation7 + $0x18] sm:$0xf]
        %v315 = vld [vmem:[#allocation7 + $0x1c] sm:$0xf]
        %v316 = vld [vmem:[%s266] sm:$0xf]
        %v317 = vld [vmem:[#allocation8] sm:$0xf]
        %v318 = vld [vmem:[#allocation8 + $0x4] sm:$0xf]
        %v319 = vld [vmem:[#allocation8 + $0x8] sm:$0xf]
        %v320 = vld [vmem:[#allocation8 + $0xc] sm:$0xf]
        %v321 = vld [vmem:[#allocation8 + $0x10] sm:$0xf]
        %v322 = vld [vmem:[#allocation8 + $0x14] sm:$0xf]
        %v323 = vld [vmem:[#allocation8 + $0x18] sm:$0xf]
        %v324 = vld [vmem:[#allocation8 + $0x1c] sm:$0xf]
        %v333 = vunpack.c.l.b16 %v317
        %v334 = vunpack.c.l.b16 %v318
        %v335 = vunpack.c.l.b16 %v319
        %v336 = vunpack.c.l.b16 %v320
        %v337 = vunpack.c.l.b16 %v321
        %v338 = vunpack.c.l.b16 %v322
        %v339 = vunpack.c.l.b16 %v323
        %v340 = vunpack.c.l.b16 %v324
        %v341 = vpack.c.b16 %v334, %v333
        %v342 = vpack.c.b16 %v336, %v335
        %v343 = vpack.c.b16 %v338, %v337
        %v344 = vpack.c.b16 %v340, %v339
        %vm349 = vcmask 523264
        %v351 = vsel %vm349, %v316, 0
        %353 = vmatprep.subr.bf16.mxu0 0
        %354 = vmatpush1.bf16.msra.mxu0 %v341
        %355 = vmatprep.subr.bf16.mxu0 0
        %356 = vmatpush1.bf16.msra.mxu0 %v342
        %357 = vmatprep.subr.bf16.mxu0 0
        %358 = vmatpush1.bf16.msra.mxu0 %v343
        %359 = vmatprep.subr.bf16.mxu0 0
        %360 = vmatpush1.bf16.msra.mxu0 %v344
        %361 = vmatprep.subr.bf16.mxu0 0
        %362 = vmatpush1.bf16.msra.mxu0 0
        %363 = vmatprep.subr.bf16.mxu0 0
        %364 = vmatpush1.bf16.msra.mxu0 0
        %365 = vmatprep.subr.bf16.mxu0 0
        %366 = vmatpush1.bf16.msra.mxu0 0
        %367 = vmatprep.subr.bf16.mxu0 0
        %368 = vmatpush1.bf16.msra.mxu0 0
        %369 = vmatprep.subr.bf16.mxu0 0
        %370 = vmatpush1.bf16.msra.mxu0 0
        %371 = vmatprep.subr.bf16.mxu0 0
        %372 = vmatpush1.bf16.msra.mxu0 0
        %373 = vmatprep.subr.bf16.mxu0 0
        %374 = vmatpush1.bf16.msra.mxu0 0
        %375 = vmatprep.subr.bf16.mxu0 0
        %376 = vmatpush1.bf16.msra.mxu0 0
        %377 = vmatprep.subr.bf16.mxu0 0
        %378 = vmatpush1.bf16.msra.mxu0 0
        %379 = vmatprep.subr.bf16.mxu0 0
        %380 = vmatpush1.bf16.msra.mxu0 0
        %381 = vmatprep.subr.bf16.mxu0 0
        %382 = vmatpush1.bf16.msra.mxu0 0
        %383 = vmatprep.subr.bf16.mxu0 0
        %384 = vmatpush1.bf16.msra.mxu0 0
        %385 = vmatprep.mubr.bf16.mxu0 0
        %386 = vmatmul.mubr.bf16.gmra.mrb[0].mxu0 %v351
        %v387 = vpop.f32.mrb[0].mxu0
        %v388 = vadd.f32 0.0, %v387
        %v389 = vpop.f32.mrb[0].mxu0
        %v390 = vpop.f32.mrb[0].mxu0
        %v391 = vpop.f32.mrb[0].mxu0
        %392 = vdwg.mxu0
        %v401 = vunpack.c.l.b16 %v308
        %v402 = vunpack.c.l.b16 %v309
        %v403 = vunpack.c.l.b16 %v310
        %v404 = vunpack.c.l.b16 %v311
        %v405 = vunpack.c.l.b16 %v312
        %v406 = vunpack.c.l.b16 %v313
        %v407 = vunpack.c.l.b16 %v314
        %v408 = vunpack.c.l.b16 %v315
        %v409 = vpack.c.b16 %v402, %v401
        %v410 = vpack.c.b16 %v404, %v403
        %v411 = vpack.c.b16 %v406, %v405
        %v412 = vpack.c.b16 %v408, %v407
        %v418 = vsel %vm349, %v307, 0
        %420 = vmatprep.subr.bf16.mxu0 0
        %421 = vmatpush1.bf16.msra.mxu0 %v409
        %422 = vmatprep.subr.bf16.mxu0 0
        %423 = vmatpush1.bf16.msra.mxu0 %v410
        %424 = vmatprep.subr.bf16.mxu0 0
        %425 = vmatpush1.bf16.msra.mxu0 %v411
        %426 = vmatprep.subr.bf16.mxu0 0
        %427 = vmatpush1.bf16.msra.mxu0 %v412
        %428 = vmatprep.subr.bf16.mxu0 0
        %429 = vmatpush1.bf16.msra.mxu0 0
        %430 = vmatprep.subr.bf16.mxu0 0
        %431 = vmatpush1.bf16.msra.mxu0 0
        %432 = vmatprep.subr.bf16.mxu0 0
        %433 = vmatpush1.bf16.msra.mxu0 0
        %434 = vmatprep.subr.bf16.mxu0 0
        %435 = vmatpush1.bf16.msra.mxu0 0
        %436 = vmatprep.subr.bf16.mxu0 0
        %437 = vmatpush1.bf16.msra.mxu0 0
        %438 = vmatprep.subr.bf16.mxu0 0
        %439 = vmatpush1.bf16.msra.mxu0 0
        %440 = vmatprep.subr.bf16.mxu0 0
        %441 = vmatpush1.bf16.msra.mxu0 0
        %442 = vmatprep.subr.bf16.mxu0 0
        %443 = vmatpush1.bf16.msra.mxu0 0
        %444 = vmatprep.subr.bf16.mxu0 0
        %445 = vmatpush1.bf16.msra.mxu0 0
        %446 = vmatprep.subr.bf16.mxu0 0
        %447 = vmatpush1.bf16.msra.mxu0 0
        %448 = vmatprep.subr.bf16.mxu0 0
        %449 = vmatpush1.bf16.msra.mxu0 0
        %450 = vmatprep.subr.bf16.mxu0 0
        %451 = vmatpush1.bf16.msra.mxu0 0
        %452 = vmatprep.mubr.bf16.mxu0 0
        %453 = vmatmul.mubr.bf16.gmra.mrb[0].mxu0 %v418
        %v454 = vpop.f32.mrb[0].mxu0
        %v455 = vadd.f32 %v388, %v454
        %v456 = vpop.f32.mrb[0].mxu0
        %v457 = vpop.f32.mrb[0].mxu0
        %v458 = vpop.f32.mrb[0].mxu0
        %459 = vdwg.mxu0
        %v460 = vld [vmem:[%s4] sm:$0x1]
        %v462 = vlaneseq
        %v463 = vshrl.u32 %v462, 7
        %v464 = vsub.s32 0, %v463
        %v465 = vrot.slane %v460, %v464
        %v467 = vadd.f32 %v455, %v465
        %v468 = vmul.f32 %v467, 0.2
        %v469 = vmax.f32 %v467, %v468
        %470 = vst [vmem:[%s305] sm:$0xff] %v469
        %s471 = sand.u32 %s149, 1
        %s472 = scalar_lea.sflag [#allocation4], %s471
        %s473 = sand.u32 %s149, 1
        %s474 = smul.addr %s473, 8
        %s475 = scalar_lea.vmem [#allocation10], %s474
        // Predicated region
        $region57: #{tpu_custom_call.1} parent=39 // pred_check
          %p476 = pneg %p159
        $region58: #{tpu_custom_call.1} parent=39 // pred_check_branch
          %478 = sbr.rel (%p476) target = $region60
        $region59: #{tpu_custom_call.1} parent=39 // pred_region
          %s480 = ssub.s32 128, 128
          %481 = vsyncadd %s472, %s480
          %s482 = smul.addr %s26, 128
          %s483 = scalar_lea.hbm %s5, %s482
          %s485 = sshll.u32 %s475, 4
          %s486 = int_to_ptr.vmem [resolvable:$true] %s485
          %488 = dma.vmem_to_hbm [thread:$0]  %s486, 128, %s483, %s472
        $region60: #{tpu_custom_call.1} parent=39 // pred_fallthru
          _
      $region40: #{tpu_custom_call.1} parent=5 // pred_fallthru
        _
      %p489 = scmp.le.s32.totalorder 2, %s21
      // Predicated region
      $region61: #{tpu_custom_call.1} parent=5 // pred_check
        %p490 = pneg %p489
      $region62: #{tpu_custom_call.1} parent=5 // pred_check_branch
        %492 = sbr.rel (%p490) target = $region64
      $region63: #{tpu_custom_call.1} parent=5 // pred_region
        %s493 = ssub.s32 %s21, 2
        // Predicated region
        $region65: #{tpu_custom_call.1} parent=63 // pred_check
          %p494 = pneg %p165
        $region66: #{tpu_custom_call.1} parent=63 // pred_check_branch
          %496 = sbr.rel (%p494) target = $region68
        $region67: #{tpu_custom_call.1} parent=63 // pred_region
          %s497 = sand.u32 %s150, 1
          %s498 = scalar_lea.sflag [#allocation4], %s497
          %s499 = sand.u32 %s150, 1
          %s500 = smul.addr %s499, 8
          %s501 = scalar_lea.vmem [#allocation10], %s500
          %502 = dma.done %s498, 128
        $region68: #{tpu_custom_call.1} parent=63 // pred_fallthru
          _
      $region64: #{tpu_custom_call.1} parent=5 // pred_fallthru
        _
    $region6: #{tpu_custom_call.1} parent=1 // loop_footer
      %s25 = sadd.s32 1, %s21
    $region7: #{tpu_custom_call.1} parent=1 // loop_footer_branch
      %20 = sbr.rel target = $region3
    $region8: #{tpu_custom_call.1} parent=1 // loop_exit
      _
    %503 = vsyncpa [#allocation3], 1
    %s504 = scalar_lea.sflag [#allocation3], 1
    %505 = vsyncpa %s504, 1
    %506 = vsyncpa [#allocation6], 1
    %s507 = scalar_lea.sflag [#allocation6], 1
    %508 = vsyncpa %s507, 1
    %509 = vsyncpa [#allocation9], 1
    %510 = vsyncpa [#allocation4], 1
    %s511 = scalar_lea.sflag [#allocation4], 1
    %512 = vsyncpa %s511, 1

</llo_original>
